<compile_context>
chip_gen: v7x
topology: tpu7x:2x2x1
jax: 0.10.0
libtpu: 0.0.40
codegen_flags: <defaults>
</compile_context>

<pallas_src>
import functools

import jax
import jax.numpy as jnp
from jax.experimental import pallas as pl
from jax.experimental.pallas import tpu as pltpu

K = 3        # conv kernel size
PAD = 1      # reflection pad on each side
EPS = 1e-5   # InstanceNorm2d eps


def _instance_norm(h):
    # h: (C, HW) f32 -- normalize each channel over the spatial (lane) axis.
    mean = jnp.mean(h, axis=1, keepdims=True)
    cen = h - mean
    var = jnp.mean(cen * cen, axis=1, keepdims=True)
    return cen * jax.lax.rsqrt(var + EPS)


def conv_in_relu_kernel(p_ref, w_ref, b_ref, o_ref):
    # p_ref: (1, K*K*C, HW)  im2col patches (lane-dense spatial axis)
    # w_ref: (C, K*K*C)      reshaped conv weight
    # b_ref: (C, 1)          bias
    # o_ref: (1, C, HW)      ReLU(InstanceNorm(conv + bias))
    acc = jnp.dot(w_ref[...], p_ref[0], preferred_element_type=jnp.float32)
    acc = acc + b_ref[...]
    o_ref[0] = jnp.maximum(_instance_norm(acc), 0.0).astype(o_ref.dtype)


def conv_in_res_relu_kernel(p_ref, w_ref, b_ref, x_ref, o_ref):
    # Second half: conv + bias + InstanceNorm, then residual add + final ReLU.
    # x_ref: (1, C, HW) residual input.
    acc = jnp.dot(w_ref[...], p_ref[0], preferred_element_type=jnp.float32)
    acc = acc + b_ref[...]
    o_ref[0] = jnp.maximum(x_ref[0] + _instance_norm(acc), 0.0).astype(o_ref.dtype)


def _im2col_3x3(x_pad, H, W):
    # x_pad: (N, C, H+2, W+2) -> (N, C*9, H*W); channel-major ordering matches
    # the OIHW weight reshape (cin, kh, kw).
    N, C = x_pad.shape[0], x_pad.shape[1]
    cols = [x_pad[:, :, kh:kh + H, kw:kw + W] for kh in range(K) for kw in range(K)]
    p = jnp.stack(cols, axis=2)               # (N, C, 9, H, W)
    return p.reshape(N, C * K * K, H * W)


def _conv_in_call(kernel, patches, w_mat, b_col, extras, out_shape, n_grid):
    C, KKC = w_mat.shape
    HW = patches.shape[2]
    in_specs = [
        pl.BlockSpec((1, KKC, HW), lambda n: (n, 0, 0)),   # per-image patches
        pl.BlockSpec((C, KKC), lambda n: (0, 0)),          # shared weights
        pl.BlockSpec((C, 1), lambda n: (0, 0)),            # shared bias
    ]
    args = [patches, w_mat, b_col]
    for e in extras:                                       # optional residual
        in_specs.append(pl.BlockSpec((1, C, HW), lambda n: (n, 0, 0)))
        args.append(e)
    return pl.pallas_call(
        kernel,
        out_shape=out_shape,
        grid=(n_grid,),
        in_specs=in_specs,
        out_specs=pl.BlockSpec((1, C, HW), lambda n: (n, 0, 0)),
        compiler_params=pltpu.CompilerParams(dimension_semantics=("parallel",)),
    )(*args)


@functools.partial(jax.jit, static_argnames=())
def resblock(x_nchw, w1, b1, w2, b2):
    """ResBlock forward: ReLU(x + IN(conv2(pad(ReLU(IN(conv1(pad(x)))))))).

    x_nchw: (N, C, H, W) f32;  w1,w2: (C, C, 3, 3);  b1,b2: (C,)
    """
    N, C, H, W = x_nchw.shape
    HW = H * W

    # Glue (pure data movement, handled by XLA): reflection pad + im2col,
    # weight/bias reshapes into the lane-dense matmul layout.
    x_pad = jnp.pad(x_nchw, ((0, 0), (0, 0), (PAD, PAD), (PAD, PAD)), mode="reflect")
    p1 = _im2col_3x3(x_pad, H, W)                         # (N, C*9, HW)
    w1_mat = w1.reshape(C, C * K * K)
    w2_mat = w2.reshape(C, C * K * K)
    b1_col = b1.reshape(C, 1)
    b2_col = b2.reshape(C, 1)

    out_shape = jax.ShapeDtypeStruct((N, C, HW), jnp.float32)

    # Kernel 1: conv1 + bias + InstanceNorm + ReLU  (one matmul per image).
    y1 = _conv_in_call(conv_in_relu_kernel, p1, w1_mat, b1_col, [], out_shape, N)

    # Glue for conv2: reflection pad of the intermediate + im2col.
    y1_pad = jnp.pad(y1.reshape(N, C, H, W),
                     ((0, 0), (0, 0), (PAD, PAD), (PAD, PAD)), mode="reflect")
    p2 = _im2col_3x3(y1_pad, H, W)

    # Kernel 2: conv2 + bias + InstanceNorm + residual add + final ReLU.
    x_flat = x_nchw.reshape(N, C, HW)
    out = _conv_in_call(conv_in_res_relu_kernel, p2, w2_mat, b2_col,
                        [x_flat], out_shape, N)

    return out.reshape(N, C, H, W)


if __name__ == "__main__":
    # Small deterministic setup consistent with the module: dim=4, batch=2, 16x16.
    dim = 4
    N, H, W = 2, 16, 16

    key = jax.random.PRNGKey(0)
    kx, kw1, kb1, kw2, kb2 = jax.random.split(key, 5)

    x = jax.random.normal(kx, (N, dim, H, W), dtype=jnp.float32)
    fan_in = dim * K * K
    bound = 1.0 / (fan_in ** 0.5)
    w1 = jax.random.uniform(kw1, (dim, dim, K, K), jnp.float32, -bound, bound)
    b1 = jax.random.uniform(kb1, (dim,), jnp.float32, -bound, bound)
    w2 = jax.random.uniform(kw2, (dim, dim, K, K), jnp.float32, -bound, bound)
    b2 = jax.random.uniform(kb2, (dim,), jnp.float32, -bound, bound)

    out = resblock(x, w1, b1, w2, b2)
    out = jax.block_until_ready(out)

    # Pure-JAX reference: reflect pad -> conv -> bias -> IN -> ReLU ->
    # reflect pad -> conv -> bias -> IN -> residual -> ReLU.
    def conv3x3_reflect(h, w, b):
        hp = jnp.pad(h, ((0, 0), (0, 0), (1, 1), (1, 1)), mode="reflect")
        y = jax.lax.conv_general_dilated(hp, w, (1, 1), "VALID",
                                         dimension_numbers=("NCHW", "OIHW", "NCHW"))
        return y + b[None, :, None, None]

    def inorm(h):
        m = jnp.mean(h, axis=(2, 3), keepdims=True)
        v = jnp.mean((h - m) ** 2, axis=(2, 3), keepdims=True)
        return (h - m) * jax.lax.rsqrt(v + EPS)

    h = jax.nn.relu(inorm(conv3x3_reflect(x, w1, b1)))
    h = inorm(conv3x3_reflect(h, w2, b2))
    ref = jax.nn.relu(x + h)

    assert out.shape == (N, dim, H, W)
    assert jnp.allclose(out, ref, atol=2e-4, rtol=2e-4), \
        float(jnp.max(jnp.abs(out - ref)))

    print("KERNEL_OK")
</pallas_src>

<mosaic_0001>
module attributes {stable_mosaic.version = 11 : i64} {
  func.func @conv_in_relu_kernel(%arg0: i32, %arg1: memref<1x36x256xf32, #tpu.memory_space<vmem>>, %arg2: memref<4x36xf32, #tpu.memory_space<vmem>>, %arg3: memref<4x1xf32, #tpu.memory_space<vmem>>, %arg4: memref<1x4x256xf32, #tpu.memory_space<vmem>>) attributes {dimension_semantics = [#tpu.dimension_semantics<parallel>], iteration_bounds = array<i64: 2>, scalar_prefetch = 0 : i64, scratch_operands = 0 : i64, tpu.core_type = #tpu.core_type<tc>, window_params = [{transform_indices = @transform_0, window_bounds = array<i64: 1, 36, 256>}, {pipeline_mode = #tpu.pipeline_mode<synchronous>, transform_indices = @transform_1, window_bounds = array<i64: 4, 36>}, {pipeline_mode = #tpu.pipeline_mode<synchronous>, transform_indices = @transform_2, window_bounds = array<i64: 4, 1>}, {transform_indices = @transform_3, window_bounds = array<i64: 1, 4, 256>}]} {
    %c0 = arith.constant 0 : index
    %c0_0 = arith.constant 0 : index
    %0 = vector.load %arg2[%c0, %c0_0] : memref<4x36xf32, #tpu.memory_space<vmem>>, vector<4x36xf32>
    %c0_1 = arith.constant 0 : index
    %c0_2 = arith.constant 0 : index
    %c0_3 = arith.constant 0 : index
    %1 = vector.load %arg1[%c0_1, %c0_2, %c0_3] : memref<1x36x256xf32, #tpu.memory_space<vmem>>, vector<1x36x256xf32>
    %2 = vector.shape_cast %1 : vector<1x36x256xf32> to vector<36x256xf32>
    %cst = arith.constant dense<0.000000e+00> : vector<4x256xf32>
    %3 = tpu.matmul %0, %2, %cst {dimension_numbers = #tpu.dot_dimension_numbers<[1], [0], [0], [1], [0, 0, 1, 1], [], []>} : vector<4x36xf32>, vector<36x256xf32>, vector<4x256xf32> -> vector<4x256xf32>
    %c0_4 = arith.constant 0 : index
    %c0_5 = arith.constant 0 : index
    %4 = vector.load %arg3[%c0_4, %c0_5] : memref<4x1xf32, #tpu.memory_space<vmem>>, vector<4x1xf32>
    %5 = vector.broadcast %4 : vector<4x1xf32> to vector<4x256xf32>
    %6 = arith.addf %3, %5 : vector<4x256xf32>
    %cst_6 = arith.constant dense<0.000000e+00> : vector<4xf32>
    %7 = vector.multi_reduction <add>, %6, %cst_6 [1] : vector<4x256xf32> to vector<4xf32>
    %8 = vector.shape_cast %7 : vector<4xf32> to vector<4x1xf32>
    %cst_7 = arith.constant 2.560000e+02 : f32
    %9 = vector.broadcast %cst_7 : f32 to vector<4x1xf32>
    %10 = arith.divf %8, %9 : vector<4x1xf32>
    %11 = vector.broadcast %10 : vector<4x1xf32> to vector<4x256xf32>
    %12 = arith.subf %6, %11 : vector<4x256xf32>
    %13 = arith.mulf %12, %12 : vector<4x256xf32>
    %cst_8 = arith.constant dense<0.000000e+00> : vector<4xf32>
    %14 = vector.multi_reduction <add>, %13, %cst_8 [1] : vector<4x256xf32> to vector<4xf32>
    %15 = vector.shape_cast %14 : vector<4xf32> to vector<4x1xf32>
    %cst_9 = arith.constant 2.560000e+02 : f32
    %16 = vector.broadcast %cst_9 : f32 to vector<4x1xf32>
    %17 = arith.divf %15, %16 : vector<4x1xf32>
    %cst_10 = arith.constant 9.99999974E-6 : f32
    %18 = vector.broadcast %cst_10 : f32 to vector<4x1xf32>
    %19 = arith.addf %17, %18 : vector<4x1xf32>
    %20 = math.rsqrt %19 : vector<4x1xf32>
    %21 = vector.broadcast %20 : vector<4x1xf32> to vector<4x256xf32>
    %22 = arith.mulf %12, %21 : vector<4x256xf32>
    %cst_11 = arith.constant 0.000000e+00 : f32
    %23 = vector.broadcast %cst_11 : f32 to vector<4x256xf32>
    %24 = arith.maximumf %22, %23 : vector<4x256xf32>
    %c0_12 = arith.constant 0 : index
    %c0_13 = arith.constant 0 : index
    %c0_14 = arith.constant 0 : index
    %25 = vector.load %arg4[%c0_12, %c0_13, %c0_14] : memref<1x4x256xf32, #tpu.memory_space<vmem>>, vector<1x4x256xf32>
    %26 = vector.shape_cast %25 : vector<1x4x256xf32> to vector<4x256xf32>
    %27 = vector.shape_cast %24 : vector<4x256xf32> to vector<1x4x256xf32>
    tpu.vector_store %arg4[%c0_12, %c0_13, %c0_14], %27 {strides = array<i32>} : memref<1x4x256xf32, #tpu.memory_space<vmem>>, vector<1x4x256xf32>,
    return
  }
  func.func @transform_0(%arg0: i32) -> (i32, i32, i32) {
    %c0_i32 = arith.constant 0 : i32
    %c0_i32_0 = arith.constant 0 : i32
    %c0_i32_1 = arith.constant 0 : i32
    return %arg0, %c0_i32, %c0_i32_0 : i32, i32, i32
  }
  func.func @transform_1(%arg0: i32) -> (i32, i32) {
    %c0_i32 = arith.constant 0 : i32
    %c0_i32_0 = arith.constant 0 : i32
    %c0_i32_1 = arith.constant 0 : i32
    return %c0_i32, %c0_i32_0 : i32, i32
  }
  func.func @transform_2(%arg0: i32) -> (i32, i32) {
    %c0_i32 = arith.constant 0 : i32
    %c0_i32_0 = arith.constant 0 : i32
    %c0_i32_1 = arith.constant 0 : i32
    return %c0_i32, %c0_i32_0 : i32, i32
  }
  func.func @transform_3(%arg0: i32) -> (i32, i32, i32) {
    %c0_i32 = arith.constant 0 : i32
    %c0_i32_0 = arith.constant 0 : i32
    %c0_i32_1 = arith.constant 0 : i32
    return %arg0, %c0_i32, %c0_i32_0 : i32, i32, i32
  }
}

module attributes {stable_mosaic.version = 11 : i64} {
  func.func @conv_in_res_relu_kernel(%arg0: i32, %arg1: memref<1x36x256xf32, #tpu.memory_space<vmem>>, %arg2: memref<4x36xf32, #tpu.memory_space<vmem>>, %arg3: memref<4x1xf32, #tpu.memory_space<vmem>>, %arg4: memref<1x4x256xf32, #tpu.memory_space<vmem>>, %arg5: memref<1x4x256xf32, #tpu.memory_space<vmem>>) attributes {dimension_semantics = [#tpu.dimension_semantics<parallel>], iteration_bounds = array<i64: 2>, scalar_prefetch = 0 : i64, scratch_operands = 0 : i64, tpu.core_type = #tpu.core_type<tc>, window_params = [{transform_indices = @transform_0, window_bounds = array<i64: 1, 36, 256>}, {pipeline_mode = #tpu.pipeline_mode<synchronous>, transform_indices = @transform_1, window_bounds = array<i64: 4, 36>}, {pipeline_mode = #tpu.pipeline_mode<synchronous>, transform_indices = @transform_2, window_bounds = array<i64: 4, 1>}, {transform_indices = @transform_3, window_bounds = array<i64: 1, 4, 256>}, {transform_indices = @transform_4, window_bounds = array<i64: 1, 4, 256>}]} {
    %c0 = arith.constant 0 : index
    %c0_0 = arith.constant 0 : index
    %0 = vector.load %arg2[%c0, %c0_0] : memref<4x36xf32, #tpu.memory_space<vmem>>, vector<4x36xf32>
    %c0_1 = arith.constant 0 : index
    %c0_2 = arith.constant 0 : index
    %c0_3 = arith.constant 0 : index
    %1 = vector.load %arg1[%c0_1, %c0_2, %c0_3] : memref<1x36x256xf32, #tpu.memory_space<vmem>>, vector<1x36x256xf32>
    %2 = vector.shape_cast %1 : vector<1x36x256xf32> to vector<36x256xf32>
    %cst = arith.constant dense<0.000000e+00> : vector<4x256xf32>
    %3 = tpu.matmul %0, %2, %cst {dimension_numbers = #tpu.dot_dimension_numbers<[1], [0], [0], [1], [0, 0, 1, 1], [], []>} : vector<4x36xf32>, vector<36x256xf32>, vector<4x256xf32> -> vector<4x256xf32>
    %c0_4 = arith.constant 0 : index
    %c0_5 = arith.constant 0 : index
    %4 = vector.load %arg3[%c0_4, %c0_5] : memref<4x1xf32, #tpu.memory_space<vmem>>, vector<4x1xf32>
    %5 = vector.broadcast %4 : vector<4x1xf32> to vector<4x256xf32>
    %6 = arith.addf %3, %5 : vector<4x256xf32>
    %c0_6 = arith.constant 0 : index
    %c0_7 = arith.constant 0 : index
    %c0_8 = arith.constant 0 : index
    %7 = vector.load %arg4[%c0_6, %c0_7, %c0_8] : memref<1x4x256xf32, #tpu.memory_space<vmem>>, vector<1x4x256xf32>
    %8 = vector.shape_cast %7 : vector<1x4x256xf32> to vector<4x256xf32>
    %cst_9 = arith.constant dense<0.000000e+00> : vector<4xf32>
    %9 = vector.multi_reduction <add>, %6, %cst_9 [1] : vector<4x256xf32> to vector<4xf32>
    %10 = vector.shape_cast %9 : vector<4xf32> to vector<4x1xf32>
    %cst_10 = arith.constant 2.560000e+02 : f32
    %11 = vector.broadcast %cst_10 : f32 to vector<4x1xf32>
    %12 = arith.divf %10, %11 : vector<4x1xf32>
    %13 = vector.broadcast %12 : vector<4x1xf32> to vector<4x256xf32>
    %14 = arith.subf %6, %13 : vector<4x256xf32>
    %15 = arith.mulf %14, %14 : vector<4x256xf32>
    %cst_11 = arith.constant dense<0.000000e+00> : vector<4xf32>
    %16 = vector.multi_reduction <add>, %15, %cst_11 [1] : vector<4x256xf32> to vector<4xf32>
    %17 = vector.shape_cast %16 : vector<4xf32> to vector<4x1xf32>
    %cst_12 = arith.constant 2.560000e+02 : f32
    %18 = vector.broadcast %cst_12 : f32 to vector<4x1xf32>
    %19 = arith.divf %17, %18 : vector<4x1xf32>
    %cst_13 = arith.constant 9.99999974E-6 : f32
    %20 = vector.broadcast %cst_13 : f32 to vector<4x1xf32>
    %21 = arith.addf %19, %20 : vector<4x1xf32>
    %22 = math.rsqrt %21 : vector<4x1xf32>
    %23 = vector.broadcast %22 : vector<4x1xf32> to vector<4x256xf32>
    %24 = arith.mulf %14, %23 : vector<4x256xf32>
    %25 = arith.addf %8, %24 : vector<4x256xf32>
    %cst_14 = arith.constant 0.000000e+00 : f32
    %26 = vector.broadcast %cst_14 : f32 to vector<4x256xf32>
    %27 = arith.maximumf %25, %26 : vector<4x256xf32>
    %c0_15 = arith.constant 0 : index
    %c0_16 = arith.constant 0 : index
    %c0_17 = arith.constant 0 : index
    %28 = vector.load %arg5[%c0_15, %c0_16, %c0_17] : memref<1x4x256xf32, #tpu.memory_space<vmem>>, vector<1x4x256xf32>
    %29 = vector.shape_cast %28 : vector<1x4x256xf32> to vector<4x256xf32>
    %30 = vector.shape_cast %27 : vector<4x256xf32> to vector<1x4x256xf32>
    tpu.vector_store %arg5[%c0_15, %c0_16, %c0_17], %30 {strides = array<i32>} : memref<1x4x256xf32, #tpu.memory_space<vmem>>, vector<1x4x256xf32>,
    return
  }
  func.func @transform_0(%arg0: i32) -> (i32, i32, i32) {
    %c0_i32 = arith.constant 0 : i32
    %c0_i32_0 = arith.constant 0 : i32
    %c0_i32_1 = arith.constant 0 : i32
    return %arg0, %c0_i32, %c0_i32_0 : i32, i32, i32
  }
  func.func @transform_1(%arg0: i32) -> (i32, i32) {
    %c0_i32 = arith.constant 0 : i32
    %c0_i32_0 = arith.constant 0 : i32
    %c0_i32_1 = arith.constant 0 : i32
    return %c0_i32, %c0_i32_0 : i32, i32
  }
  func.func @transform_2(%arg0: i32) -> (i32, i32) {
    %c0_i32 = arith.constant 0 : i32
    %c0_i32_0 = arith.constant 0 : i32
    %c0_i32_1 = arith.constant 0 : i32
    return %c0_i32, %c0_i32_0 : i32, i32
  }
  func.func @transform_3(%arg0: i32) -> (i32, i32, i32) {
    %c0_i32 = arith.constant 0 : i32
    %c0_i32_0 = arith.constant 0 : i32
    %c0_i32_1 = arith.constant 0 : i32
    return %arg0, %c0_i32, %c0_i32_0 : i32, i32, i32
  }
  func.func @transform_4(%arg0: i32) -> (i32, i32, i32) {
    %c0_i32 = arith.constant 0 : i32
    %c0_i32_0 = arith.constant 0 : i32
    %c0_i32_1 = arith.constant 0 : i32
    return %arg0, %c0_i32, %c0_i32_0 : i32, i32, i32
  }
}

</mosaic_0001>

<llo_original>
// kernel: resblock.2
$region0: #{resblock.2}
  #allocation0 [shape = 'u32[]', space=smem, size = 0x4, offset = 0x4, fixed_abs, tag = 'smem constant byte address 0x4 - core index']
  #allocation1 [shape = 'u32[144,128]{1,0:T(1,128)}', space=vmem, size = 0x12000, scoped, tag = 'internal scratch']
  %s0 = inlined_call_operand.vmem [shape: f32[2,36,256], index: 0, kind: input, shape index: {}]
  %s1 = inlined_call_operand.vmem [shape: f32[4,36], index: 1, kind: input, shape index: {}]
  %s2 = inlined_call_operand.vmem [shape: f32[4,1], index: 2, kind: input, shape index: {}]
  %s3 = inlined_call_operand.vmem [shape: f32[2,4,256], index: 3, kind: output, shape index: {}]
  %s4 = sld [smem:[#allocation0]]
  $region45: #{resblock.2} parent=0
    _
  %s6 = ssub.s32 1, %s4
  %s7 = scalar_select 0, %s6, %s4
  loop: start=0, step=1, limit=4
  $region2: #{resblock.2} parent=0 // loop_pre_header
    _
  $region3: #{resblock.2} parent=0 // loop_header
    %s9 = sphi 0, %s13
    %p10 = scmp.ge.s32.totalorder %s9, 4
    %s19 = sphi 0, %s21
    %s22 = sphi 0, %s19
    %s23 = sphi 0, %s22
    %s39 = sphi 0, %s23
    %s43 = sphi 0, %s43
    %s45 = sphi 0, %s43
    %s46 = sphi 0, %s45
    %s60 = sphi 0, %s46
    %s64 = sphi 0, %s64
    %s66 = sphi 0, %s64
    %s67 = sphi 0, %s66
    %s81 = sphi 0, %s67
    %s87 = sphi 0, %s89
    %s90 = sphi 0, %s87
    %s91 = sphi 0, %s90
    %s107 = sphi 0, %s91
  $region4: #{resblock.2} parent=0 // loop_header_branch
    %12 = sbr.rel (%p10) target = $region8
  $region5: #{resblock.2} parent=0 // loop_body
    %s14 = ssub.s32 %s9, 1
    %s15 = ssub.s32 %s9, 2
    %s16 = sadd.s32 %s9, 1
    %s17 = ssub.s32 %s9, %s16
    %p18 = scmp.eq.s32.totalorder %s17, 0
    %s20 = sadd.s32 %s19, 1
    %s21 = scalar_select %p18, %s19, %s20
    %p24 = pneg %p18
    %p25 = scmp.eq.s32.totalorder %s9, 1
    %p26 = por %p24, %p25
    %p27 = scmp.ne.s32.totalorder %s19, %s22
    %p28 = scmp.eq.s32.totalorder %s9, 0
    %p29 = por %p27, %p28
    %p30 = scmp.ne.s32.totalorder %s19, %s22
    %p31 = scmp.eq.s32.totalorder %s14, 1
    %p32 = por %p30, %p31
    %p33 = scmp.ne.s32.totalorder %s22, %s23
    %p34 = scmp.eq.s32.totalorder %s14, 0
    %p35 = por %p33, %p34
    %p36 = scmp.ne.s32.totalorder %s22, %s23
    %p37 = scmp.eq.s32.totalorder %s15, 1
    %p38 = por %p36, %p37
    %p40 = scmp.ne.s32.totalorder %s23, %s39
    %p41 = scmp.eq.s32.totalorder %s15, 0
    %p42 = por %p40, %p41
    %s44 = sadd.s32 %s43, 1
    %p47 = scmp.eq.s32.totalorder %s9, 1
    %p48 = scmp.ne.s32.totalorder %s43, %s45
    %p49 = scmp.eq.s32.totalorder %s9, 0
    %p50 = por %p48, %p49
    %p51 = scmp.ne.s32.totalorder %s43, %s45
    %p52 = scmp.eq.s32.totalorder %s14, 1
    %p53 = por %p51, %p52
    %p54 = scmp.ne.s32.totalorder %s45, %s46
    %p55 = scmp.eq.s32.totalorder %s14, 0
    %p56 = por %p54, %p55
    %p57 = scmp.ne.s32.totalorder %s45, %s46
    %p58 = scmp.eq.s32.totalorder %s15, 1
    %p59 = por %p57, %p58
    %p61 = scmp.ne.s32.totalorder %s46, %s60
    %p62 = scmp.eq.s32.totalorder %s15, 0
    %p63 = por %p61, %p62
    %s65 = sadd.s32 %s64, 1
    %p68 = scmp.eq.s32.totalorder %s9, 1
    %p69 = scmp.ne.s32.totalorder %s64, %s66
    %p70 = scmp.eq.s32.totalorder %s9, 0
    %p71 = por %p69, %p70
    %p72 = scmp.ne.s32.totalorder %s64, %s66
    %p73 = scmp.eq.s32.totalorder %s14, 1
    %p74 = por %p72, %p73
    %p75 = scmp.ne.s32.totalorder %s66, %s67
    %p76 = scmp.eq.s32.totalorder %s14, 0
    %p77 = por %p75, %p76
    %p78 = scmp.ne.s32.totalorder %s66, %s67
    %p79 = scmp.eq.s32.totalorder %s15, 1
    %p80 = por %p78, %p79
    %p82 = scmp.ne.s32.totalorder %s67, %s81
    %p83 = scmp.eq.s32.totalorder %s15, 0
    %p84 = por %p82, %p83
    %s85 = ssub.s32 %s9, %s16
    %p86 = scmp.eq.s32.totalorder %s85, 0
    %s88 = sadd.s32 %s87, 1
    %s89 = scalar_select %p86, %s87, %s88
    %p92 = pneg %p86
    %p93 = scmp.eq.s32.totalorder %s9, 1
    %p94 = por %p92, %p93
    %p95 = scmp.ne.s32.totalorder %s87, %s90
    %p96 = scmp.eq.s32.totalorder %s9, 0
    %p97 = por %p95, %p96
    %p98 = scmp.ne.s32.totalorder %s87, %s90
    %p99 = scmp.eq.s32.totalorder %s14, 1
    %p100 = por %p98, %p99
    %p101 = scmp.ne.s32.totalorder %s90, %s91
    %p102 = scmp.eq.s32.totalorder %s14, 0
    %p103 = por %p101, %p102
    %p104 = scmp.ne.s32.totalorder %s90, %s91
    %p105 = scmp.eq.s32.totalorder %s15, 1
    %p106 = por %p104, %p105
    %p108 = scmp.ne.s32.totalorder %s91, %s107
    %p109 = scmp.eq.s32.totalorder %s15, 0
    %p110 = por %p108, %p109
    %p111 = scmp.le.s32.totalorder 1, %s9
    %p112 = scmp.lt.s32.totalorder %s9, 3
    %p113 = pnand %p111, %p112
    %p114 = pneg %p113
    // Predicated region
    $region9: #{resblock.2} parent=5 // pred_check
      _
    $region10: #{resblock.2} parent=5 // pred_check_branch
      %116 = sbr.rel (%p113) target = $region12
    $region11: #{resblock.2} parent=5 // pred_region
      %s117 = ssub.s32 %s9, 1
      // Predicated region
      $region13: #{resblock.2} parent=11 // pred_check
        %p118 = pneg %p56
      $region14: #{resblock.2} parent=11 // pred_check_branch
        %120 = sbr.rel (%p118) target = $region16
      $region15: #{resblock.2} parent=11 // pred_region
        _
      $region16: #{resblock.2} parent=11 // pred_fallthru
        _
      // Predicated region
      $region17: #{resblock.2} parent=11 // pred_check
        %p121 = pneg %p77
      $region18: #{resblock.2} parent=11 // pred_check_branch
        %123 = sbr.rel (%p121) target = $region20
      $region19: #{resblock.2} parent=11 // pred_region
        _
      $region20: #{resblock.2} parent=11 // pred_fallthru
        _
    $region12: #{resblock.2} parent=5 // pred_fallthru
      _
    %p124 = scmp.lt.s32.totalorder %s9, 2
    // Predicated region
    $region21: #{resblock.2} parent=5 // pred_check
      %p125 = pneg %p124
    $region22: #{resblock.2} parent=5 // pred_check_branch
      %127 = sbr.rel (%p125) target = $region24
    $region23: #{resblock.2} parent=5 // pred_region
      // Predicated region
      $region25: #{resblock.2} parent=23 // pred_check
        %p128 = pneg %p29
      $region26: #{resblock.2} parent=23 // pred_check_branch
        %130 = sbr.rel (%p128) target = $region28
      $region27: #{resblock.2} parent=23 // pred_region
        %p131 = scmp.lt.s32.totalorder %s9, 1
        %s132 = scalar_select %p131, %s9, 1
        %s133 = smul.addr %s132, 10
        %s134 = smul.addr %s133, 8
        %s135 = scalar_lea.vmem %s0, %s134
      $region28: #{resblock.2} parent=23 // pred_fallthru
        _
    $region24: #{resblock.2} parent=5 // pred_fallthru
      _
    %p136 = scmp.le.s32.totalorder 1, %s9
    %p137 = scmp.lt.s32.totalorder %s9, 3
    %p138 = pnand %p136, %p137
    %p139 = pneg %p138
    // Predicated region
    $region29: #{resblock.2} parent=5 // pred_check
      _
    $region30: #{resblock.2} parent=5 // pred_check_branch
      %141 = sbr.rel (%p138) target = $region32
    $region31: #{resblock.2} parent=5 // pred_region
      %s142 = ssub.s32 %s9, 1
      %p143 = scmp.lt.s32.totalorder %s14, 1
      %s144 = scalar_select %p143, %s14, 1
      %s145 = smul.addr %s144, 10
      %s146 = smul.addr %s145, 8
      %s147 = scalar_lea.vmem %s0, %s146
      %p148 = pneg %p35
      %p149 = pneg %p32
      %p150 = pneg %p56
      %p151 = pneg %p53
      %p152 = pneg %p77
      %p153 = pneg %p74
      %p154 = pneg %p103
      %p155 = pneg %p100
      %p156 = scmp.lt.s32.totalorder %s14, 1
      %s157 = scalar_select %p156, %s14, 1
      %s158 = smul.addr %s157, 2
      %s159 = smul.addr %s158, 4
      %s160 = scalar_lea.vmem %s3, %s159
      %p161 = scmp.lt.s32.totalorder %s14, 1
      %s162 = scalar_select %p161, %s14, 1
      %s163 = smul.addr %s162, 10
      %s164 = smul.addr %s163, 8
      %s165 = scalar_lea.vmem %s0, %s164
      %p166 = scmp.lt.s32.totalorder %s14, 1
      %s167 = scalar_select %p166, %s14, 1
      %s168 = smul.addr %s167, 2
      %s169 = smul.addr %s168, 4
      %s170 = scalar_lea.vmem %s3, %s169
      %v171 = vld [vmem:[%s1] sm:$0xf]
      %v172 = vld [vmem:[%s165] sm:$0xff]
      %v173 = vld [vmem:[%s165 + $0x8] sm:$0xff]
      %v174 = vld [vmem:[%s165 + $0x10] sm:$0xff]
      %v175 = vld [vmem:[%s165 + $0x18] sm:$0xff]
      %v176 = vld [vmem:[%s165 + $0x20] sm:$0xff]
      %v177 = vld [vmem:[%s165 + $0x28] sm:$0xff]
      %v178 = vld [vmem:[%s165 + $0x30] sm:$0xff]
      %v179 = vld [vmem:[%s165 + $0x38] sm:$0xff]
      %v180 = vld [vmem:[%s165 + $0x40] sm:$0xf]
      %v181 = vld [vmem:[%s165 + $0x48] sm:$0xf]
      %v182 = vld [vmem:[%s2] sm:$0xf]
      %184 = vset.pattern.permute.xlu0 0
      %185 = vperm.xlu0 %184, %v182
      %v186 = vpop.permute.xlu0 %185
      %vm188 = vcmask 293888
      %v190 = vsel %vm188, %v171, 0
      %vm192 = vcmask 1043456
      %v194 = vsel %vm192, %v180, 0
      %v197 = vsel %vm192, %v181, 0
      %199 = vmatprep.subr.mxu0 %v173
      %200 = vmatpush1.msra.mxu0 %v172
      %201 = vmatprep.subr.mxu0 %v175
      %202 = vmatpush1.msra.mxu0 %v174
      %203 = vmatprep.subr.mxu0 %v177
      %204 = vmatpush1.msra.mxu0 %v176
      %205 = vmatprep.subr.mxu0 %v179
      %206 = vmatpush1.msra.mxu0 %v178
      %207 = vmatprep.subr.mxu0 %v197
      %208 = vmatpush1.msra.mxu0 %v194
      %209 = vmatprep.subr.mxu0 0.0
      %210 = vmatpush1.msra.mxu0 0.0
      %211 = vmatprep.subr.mxu0 0.0
      %212 = vmatpush1.msra.mxu0 0.0
      %213 = vmatprep.subr.mxu0 0.0
      %214 = vmatpush1.msra.mxu0 0.0
      %215 = vmatprep.subr.mxu0 0.0
      %216 = vmatpush1.msra.mxu0 0.0
      %217 = vmatprep.subr.mxu0 0.0
      %218 = vmatpush1.msra.mxu0 0.0
      %219 = vmatprep.subr.mxu0 0.0
      %220 = vmatpush1.msra.mxu0 0.0
      %221 = vmatprep.subr.mxu0 0.0
      %222 = vmatpush1.msra.mxu0 0.0
      %223 = vmatprep.subr.mxu0 0.0
      %224 = vmatpush1.msra.mxu0 0.0
      %225 = vmatprep.subr.mxu0 0.0
      %226 = vmatpush1.msra.mxu0 0.0
      %227 = vmatprep.subr.mxu0 0.0
      %228 = vmatpush1.msra.mxu0 0.0
      %229 = vmatprep.subr.mxu0 0.0
      %230 = vmatpush1.msra.mxu0 0.0
      %231 = vmatprep.subr.mxu0 0.0
      %232 = vmatpush1.msra.mxu0 0.0
      %233 = vmatprep.subr.mxu0 0.0
      %234 = vmatpush1.msra.mxu0 0.0
      %235 = vmatprep.subr.mxu0 0.0
      %236 = vmatpush1.msra.mxu0 0.0
      %237 = vmatprep.subr.mxu0 0.0
      %238 = vmatpush1.msra.mxu0 0.0
      %239 = vmatprep.subr.mxu0 0.0
      %240 = vmatpush1.msra.mxu0 0.0
      %241 = vmatprep.subr.mxu0 0.0
      %242 = vmatpush1.msra.mxu0 0.0
      %243 = vmatprep.subr.mxu0 0.0
      %244 = vmatpush1.msra.mxu0 0.0
      %245 = vmatprep.subr.mxu0 0.0
      %246 = vmatpush1.msra.mxu0 0.0
      %247 = vmatprep.subr.mxu0 0.0
      %248 = vmatpush1.msra.mxu0 0.0
      %249 = vmatprep.subr.mxu0 0.0
      %250 = vmatpush1.msra.mxu0 0.0
      %251 = vmatprep.subr.mxu0 0.0
      %252 = vmatpush1.msra.mxu0 0.0
      %253 = vmatprep.subr.mxu0 0.0
      %254 = vmatpush1.msra.mxu0 0.0
      %255 = vmatprep.subr.mxu0 0.0
      %256 = vmatpush1.msra.mxu0 0.0
      %257 = vmatprep.subr.mxu0 0.0
      %258 = vmatpush1.msra.mxu0 0.0
      %259 = vmatprep.subr.mxu0 0.0
      %260 = vmatpush1.msra.mxu0 0.0
      %261 = vmatprep.subr.mxu0 0.0
      %262 = vmatpush1.msra.mxu0 0.0
      %263 = vmatprep.mubr.f32.mxu0 0.0
      %264 = vmatmul.mubr.f32.gmra.mrb[0].mxu0 %v190
      %v265 = vpop.f32.mrb[0].mxu0
      %v266 = vadd.f32 %v186, %v265
      %v267 = vpop.f32.mrb[0].mxu0
      %v268 = vadd.f32 %v186, %v267
      %269 = vdwg.mxu0
      %v270 = vsel %vm192, %v266, 0.0
      %v271 = vsel %vm192, %v268, 0.0
      %v272 = vadd.f32 %v270, %v271
      %273 = vadd.xlane.f32.xlu0 %v272
      %v274 = vpop.xlane.xlu0 %273
      %v275 = vrcp.pop 256.0
      %v276 = vmul.f32 %v274, %v275
      %v277 = vsub.f32 %v266, %v276
      %v278 = vsub.f32 %v268, %v276
      %v279 = vmul.f32 %v277, %v277
      %v280 = vmul.f32 %v278, %v278
      %v281 = vsel %vm192, %v279, 0.0
      %v282 = vsel %vm192, %v280, 0.0
      %v283 = vadd.f32 %v281, %v282
      %284 = vadd.xlane.f32.xlu0 %v283
      %v285 = vpop.xlane.xlu0 %284
      %v286 = vmul.f32 %v285, %v275
      %v287 = vadd.f32 %v286, 1e-05
      %v288 = vrsqrt.pop %v287
      %v289 = vmul.f32 %v277, %v288
      %v290 = vmul.f32 %v278, %v288
      %v291 = vmax.f32 %v289, 0.0
      %v292 = vmax.f32 %v290, 0.0
      %v295 = vcombine.low %v291, %v292
      %297 = vst [vmem:[%s170] sm:$0xff] %v295
      %p298 = scmp.lt.s32.totalorder %s14, 1
      %s299 = scalar_select %p298, %s14, 1
      %s300 = smul.addr %s299, 2
      %s301 = smul.addr %s300, 4
      %s302 = scalar_lea.vmem %s3, %s301
      // Predicated region
      $region33: #{resblock.2} parent=31 // pred_check
        %p303 = pneg %p100
      $region34: #{resblock.2} parent=31 // pred_check_branch
        %305 = sbr.rel (%p303) target = $region36
      $region35: #{resblock.2} parent=31 // pred_region
        _
      $region36: #{resblock.2} parent=31 // pred_fallthru
        _
    $region32: #{resblock.2} parent=5 // pred_fallthru
      _
    %p306 = scmp.le.s32.totalorder 2, %s9
    // Predicated region
    $region37: #{resblock.2} parent=5 // pred_check
      %p307 = pneg %p306
    $region38: #{resblock.2} parent=5 // pred_check_branch
      %309 = sbr.rel (%p307) target = $region40
    $region39: #{resblock.2} parent=5 // pred_region
      %s310 = ssub.s32 %s9, 2
      // Predicated region
      $region41: #{resblock.2} parent=39 // pred_check
        %p311 = pneg %p106
      $region42: #{resblock.2} parent=39 // pred_check_branch
        %313 = sbr.rel (%p311) target = $region44
      $region43: #{resblock.2} parent=39 // pred_region
        %p314 = scmp.lt.s32.totalorder %s15, 1
        %s315 = scalar_select %p314, %s15, 1
        %s316 = smul.addr %s315, 2
        %s317 = smul.addr %s316, 4
        %s318 = scalar_lea.vmem %s3, %s317
      $region44: #{resblock.2} parent=39 // pred_fallthru
        _
    $region40: #{resblock.2} parent=5 // pred_fallthru
      _
  $region6: #{resblock.2} parent=0 // loop_footer
    %s13 = sadd.s32 1, %s9
  $region7: #{resblock.2} parent=0 // loop_footer_branch
    %8 = sbr.rel target = $region3
  $region8: #{resblock.2} parent=0 // loop_exit
    _

// kernel: resblock.3
$region0: #{resblock.3}
  #allocation0 [shape = 'u32[]', space=smem, size = 0x4, offset = 0x4, fixed_abs, tag = 'smem constant byte address 0x4 - core index']
  #allocation1 [shape = 'u32[144,128]{1,0:T(1,128)}', space=vmem, size = 0x12000, scoped, tag = 'internal scratch']
  %s0 = inlined_call_operand.vmem [shape: f32[2,36,256], index: 0, kind: input, shape index: {}]
  %s1 = inlined_call_operand.vmem [shape: f32[4,36], index: 1, kind: input, shape index: {}]
  %s2 = inlined_call_operand.vmem [shape: f32[4,1], index: 2, kind: input, shape index: {}]
  %s3 = inlined_call_operand.vmem [shape: f32[2,4,256], index: 3, kind: input, shape index: {}]
  %s4 = inlined_call_operand.vmem [shape: f32[2,4,256], index: 4, kind: output, shape index: {}]
  %s5 = sld [smem:[#allocation0]]
  $region49: #{resblock.3} parent=0
    _
  %s7 = ssub.s32 1, %s5
  %s8 = scalar_select 0, %s7, %s5
  loop: start=0, step=1, limit=4
  $region2: #{resblock.3} parent=0 // loop_pre_header
    _
  $region3: #{resblock.3} parent=0 // loop_header
    %s10 = sphi 0, %s14
    %p11 = scmp.ge.s32.totalorder %s10, 4
    %s20 = sphi 0, %s22
    %s23 = sphi 0, %s20
    %s24 = sphi 0, %s23
    %s40 = sphi 0, %s24
    %s44 = sphi 0, %s44
    %s46 = sphi 0, %s44
    %s47 = sphi 0, %s46
    %s61 = sphi 0, %s47
    %s65 = sphi 0, %s65
    %s67 = sphi 0, %s65
    %s68 = sphi 0, %s67
    %s82 = sphi 0, %s68
    %s88 = sphi 0, %s90
    %s91 = sphi 0, %s88
    %s92 = sphi 0, %s91
    %s108 = sphi 0, %s92
    %s114 = sphi 0, %s116
    %s117 = sphi 0, %s114
    %s118 = sphi 0, %s117
    %s134 = sphi 0, %s118
  $region4: #{resblock.3} parent=0 // loop_header_branch
    %13 = sbr.rel (%p11) target = $region8
  $region5: #{resblock.3} parent=0 // loop_body
    %s15 = ssub.s32 %s10, 1
    %s16 = ssub.s32 %s10, 2
    %s17 = sadd.s32 %s10, 1
    %s18 = ssub.s32 %s10, %s17
    %p19 = scmp.eq.s32.totalorder %s18, 0
    %s21 = sadd.s32 %s20, 1
    %s22 = scalar_select %p19, %s20, %s21
    %p25 = pneg %p19
    %p26 = scmp.eq.s32.totalorder %s10, 1
    %p27 = por %p25, %p26
    %p28 = scmp.ne.s32.totalorder %s20, %s23
    %p29 = scmp.eq.s32.totalorder %s10, 0
    %p30 = por %p28, %p29
    %p31 = scmp.ne.s32.totalorder %s20, %s23
    %p32 = scmp.eq.s32.totalorder %s15, 1
    %p33 = por %p31, %p32
    %p34 = scmp.ne.s32.totalorder %s23, %s24
    %p35 = scmp.eq.s32.totalorder %s15, 0
    %p36 = por %p34, %p35
    %p37 = scmp.ne.s32.totalorder %s23, %s24
    %p38 = scmp.eq.s32.totalorder %s16, 1
    %p39 = por %p37, %p38
    %p41 = scmp.ne.s32.totalorder %s24, %s40
    %p42 = scmp.eq.s32.totalorder %s16, 0
    %p43 = por %p41, %p42
    %s45 = sadd.s32 %s44, 1
    %p48 = scmp.eq.s32.totalorder %s10, 1
    %p49 = scmp.ne.s32.totalorder %s44, %s46
    %p50 = scmp.eq.s32.totalorder %s10, 0
    %p51 = por %p49, %p50
    %p52 = scmp.ne.s32.totalorder %s44, %s46
    %p53 = scmp.eq.s32.totalorder %s15, 1
    %p54 = por %p52, %p53
    %p55 = scmp.ne.s32.totalorder %s46, %s47
    %p56 = scmp.eq.s32.totalorder %s15, 0
    %p57 = por %p55, %p56
    %p58 = scmp.ne.s32.totalorder %s46, %s47
    %p59 = scmp.eq.s32.totalorder %s16, 1
    %p60 = por %p58, %p59
    %p62 = scmp.ne.s32.totalorder %s47, %s61
    %p63 = scmp.eq.s32.totalorder %s16, 0
    %p64 = por %p62, %p63
    %s66 = sadd.s32 %s65, 1
    %p69 = scmp.eq.s32.totalorder %s10, 1
    %p70 = scmp.ne.s32.totalorder %s65, %s67
    %p71 = scmp.eq.s32.totalorder %s10, 0
    %p72 = por %p70, %p71
    %p73 = scmp.ne.s32.totalorder %s65, %s67
    %p74 = scmp.eq.s32.totalorder %s15, 1
    %p75 = por %p73, %p74
    %p76 = scmp.ne.s32.totalorder %s67, %s68
    %p77 = scmp.eq.s32.totalorder %s15, 0
    %p78 = por %p76, %p77
    %p79 = scmp.ne.s32.totalorder %s67, %s68
    %p80 = scmp.eq.s32.totalorder %s16, 1
    %p81 = por %p79, %p80
    %p83 = scmp.ne.s32.totalorder %s68, %s82
    %p84 = scmp.eq.s32.totalorder %s16, 0
    %p85 = por %p83, %p84
    %s86 = ssub.s32 %s10, %s17
    %p87 = scmp.eq.s32.totalorder %s86, 0
    %s89 = sadd.s32 %s88, 1
    %s90 = scalar_select %p87, %s88, %s89
    %p93 = pneg %p87
    %p94 = scmp.eq.s32.totalorder %s10, 1
    %p95 = por %p93, %p94
    %p96 = scmp.ne.s32.totalorder %s88, %s91
    %p97 = scmp.eq.s32.totalorder %s10, 0
    %p98 = por %p96, %p97
    %p99 = scmp.ne.s32.totalorder %s88, %s91
    %p100 = scmp.eq.s32.totalorder %s15, 1
    %p101 = por %p99, %p100
    %p102 = scmp.ne.s32.totalorder %s91, %s92
    %p103 = scmp.eq.s32.totalorder %s15, 0
    %p104 = por %p102, %p103
    %p105 = scmp.ne.s32.totalorder %s91, %s92
    %p106 = scmp.eq.s32.totalorder %s16, 1
    %p107 = por %p105, %p106
    %p109 = scmp.ne.s32.totalorder %s92, %s108
    %p110 = scmp.eq.s32.totalorder %s16, 0
    %p111 = por %p109, %p110
    %s112 = ssub.s32 %s10, %s17
    %p113 = scmp.eq.s32.totalorder %s112, 0
    %s115 = sadd.s32 %s114, 1
    %s116 = scalar_select %p113, %s114, %s115
    %p119 = pneg %p113
    %p120 = scmp.eq.s32.totalorder %s10, 1
    %p121 = por %p119, %p120
    %p122 = scmp.ne.s32.totalorder %s114, %s117
    %p123 = scmp.eq.s32.totalorder %s10, 0
    %p124 = por %p122, %p123
    %p125 = scmp.ne.s32.totalorder %s114, %s117
    %p126 = scmp.eq.s32.totalorder %s15, 1
    %p127 = por %p125, %p126
    %p128 = scmp.ne.s32.totalorder %s117, %s118
    %p129 = scmp.eq.s32.totalorder %s15, 0
    %p130 = por %p128, %p129
    %p131 = scmp.ne.s32.totalorder %s117, %s118
    %p132 = scmp.eq.s32.totalorder %s16, 1
    %p133 = por %p131, %p132
    %p135 = scmp.ne.s32.totalorder %s118, %s134
    %p136 = scmp.eq.s32.totalorder %s16, 0
    %p137 = por %p135, %p136
    %p138 = scmp.le.s32.totalorder 1, %s10
    %p139 = scmp.lt.s32.totalorder %s10, 3
    %p140 = pnand %p138, %p139
    %p141 = pneg %p140
    // Predicated region
    $region9: #{resblock.3} parent=5 // pred_check
      _
    $region10: #{resblock.3} parent=5 // pred_check_branch
      %143 = sbr.rel (%p140) target = $region12
    $region11: #{resblock.3} parent=5 // pred_region
      %s144 = ssub.s32 %s10, 1
      // Predicated region
      $region13: #{resblock.3} parent=11 // pred_check
        %p145 = pneg %p57
      $region14: #{resblock.3} parent=11 // pred_check_branch
        %147 = sbr.rel (%p145) target = $region16
      $region15: #{resblock.3} parent=11 // pred_region
        _
      $region16: #{resblock.3} parent=11 // pred_fallthru
        _
      // Predicated region
      $region17: #{resblock.3} parent=11 // pred_check
        %p148 = pneg %p78
      $region18: #{resblock.3} parent=11 // pred_check_branch
        %150 = sbr.rel (%p148) target = $region20
      $region19: #{resblock.3} parent=11 // pred_region
        _
      $region20: #{resblock.3} parent=11 // pred_fallthru
        _
    $region12: #{resblock.3} parent=5 // pred_fallthru
      _
    %p151 = scmp.lt.s32.totalorder %s10, 2
    // Predicated region
    $region21: #{resblock.3} parent=5 // pred_check
      %p152 = pneg %p151
    $region22: #{resblock.3} parent=5 // pred_check_branch
      %154 = sbr.rel (%p152) target = $region24
    $region23: #{resblock.3} parent=5 // pred_region
      // Predicated region
      $region25: #{resblock.3} parent=23 // pred_check
        %p155 = pneg %p30
      $region26: #{resblock.3} parent=23 // pred_check_branch
        %157 = sbr.rel (%p155) target = $region28
      $region27: #{resblock.3} parent=23 // pred_region
        %p158 = scmp.lt.s32.totalorder %s10, 1
        %s159 = scalar_select %p158, %s10, 1
        %s160 = smul.addr %s159, 10
        %s161 = smul.addr %s160, 8
        %s162 = scalar_lea.vmem %s0, %s161
      $region28: #{resblock.3} parent=23 // pred_fallthru
        _
      // Predicated region
      $region29: #{resblock.3} parent=23 // pred_check
        %p163 = pneg %p98
      $region30: #{resblock.3} parent=23 // pred_check_branch
        %165 = sbr.rel (%p163) target = $region32
      $region31: #{resblock.3} parent=23 // pred_region
        %p166 = scmp.lt.s32.totalorder %s10, 1
        %s167 = scalar_select %p166, %s10, 1
        %s168 = smul.addr %s167, 2
        %s169 = smul.addr %s168, 4
        %s170 = scalar_lea.vmem %s3, %s169
      $region32: #{resblock.3} parent=23 // pred_fallthru
        _
    $region24: #{resblock.3} parent=5 // pred_fallthru
      _
    %p171 = scmp.le.s32.totalorder 1, %s10
    %p172 = scmp.lt.s32.totalorder %s10, 3
    %p173 = pnand %p171, %p172
    %p174 = pneg %p173
    // Predicated region
    $region33: #{resblock.3} parent=5 // pred_check
      _
    $region34: #{resblock.3} parent=5 // pred_check_branch
      %176 = sbr.rel (%p173) target = $region36
    $region35: #{resblock.3} parent=5 // pred_region
      %s177 = ssub.s32 %s10, 1
      %p178 = scmp.lt.s32.totalorder %s15, 1
      %s179 = scalar_select %p178, %s15, 1
      %s180 = smul.addr %s179, 10
      %s181 = smul.addr %s180, 8
      %s182 = scalar_lea.vmem %s0, %s181
      %p183 = pneg %p36
      %p184 = pneg %p33
      %p185 = pneg %p57
      %p186 = pneg %p54
      %p187 = pneg %p78
      %p188 = pneg %p75
      %p189 = scmp.lt.s32.totalorder %s15, 1
      %s190 = scalar_select %p189, %s15, 1
      %s191 = smul.addr %s190, 2
      %s192 = smul.addr %s191, 4
      %s193 = scalar_lea.vmem %s3, %s192
      %p194 = pneg %p104
      %p195 = pneg %p101
      %p196 = pneg %p130
      %p197 = pneg %p127
      %p198 = scmp.lt.s32.totalorder %s15, 1
      %s199 = scalar_select %p198, %s15, 1
      %s200 = smul.addr %s199, 2
      %s201 = smul.addr %s200, 4
      %s202 = scalar_lea.vmem %s4, %s201
      %p203 = scmp.lt.s32.totalorder %s15, 1
      %s204 = scalar_select %p203, %s15, 1
      %s205 = smul.addr %s204, 10
      %s206 = smul.addr %s205, 8
      %s207 = scalar_lea.vmem %s0, %s206
      %p208 = scmp.lt.s32.totalorder %s15, 1
      %s209 = scalar_select %p208, %s15, 1
      %s210 = smul.addr %s209, 2
      %s211 = smul.addr %s210, 4
      %s212 = scalar_lea.vmem %s3, %s211
      %p213 = scmp.lt.s32.totalorder %s15, 1
      %s214 = scalar_select %p213, %s15, 1
      %s215 = smul.addr %s214, 2
      %s216 = smul.addr %s215, 4
      %s217 = scalar_lea.vmem %s4, %s216
      %v218 = vld [vmem:[%s1] sm:$0xf]
      %v219 = vld [vmem:[%s207] sm:$0xff]
      %v220 = vld [vmem:[%s207 + $0x8] sm:$0xff]
      %v221 = vld [vmem:[%s207 + $0x10] sm:$0xff]
      %v222 = vld [vmem:[%s207 + $0x18] sm:$0xff]
      %v223 = vld [vmem:[%s207 + $0x20] sm:$0xff]
      %v224 = vld [vmem:[%s207 + $0x28] sm:$0xff]
      %v225 = vld [vmem:[%s207 + $0x30] sm:$0xff]
      %v226 = vld [vmem:[%s207 + $0x38] sm:$0xff]
      %v227 = vld [vmem:[%s207 + $0x40] sm:$0xf]
      %v228 = vld [vmem:[%s207 + $0x48] sm:$0xf]
      %v229 = vld [vmem:[%s2] sm:$0xf]
      %231 = vset.pattern.permute.xlu0 0
      %232 = vperm.xlu0 %231, %v229
      %v233 = vpop.permute.xlu0 %232
      %vm235 = vcmask 293888
      %v237 = vsel %vm235, %v218, 0
      %vm239 = vcmask 1043456
      %v241 = vsel %vm239, %v227, 0
      %v244 = vsel %vm239, %v228, 0
      %246 = vmatprep.subr.mxu0 %v220
      %247 = vmatpush1.msra.mxu0 %v219
      %248 = vmatprep.subr.mxu0 %v222
      %249 = vmatpush1.msra.mxu0 %v221
      %250 = vmatprep.subr.mxu0 %v224
      %251 = vmatpush1.msra.mxu0 %v223
      %252 = vmatprep.subr.mxu0 %v226
      %253 = vmatpush1.msra.mxu0 %v225
      %254 = vmatprep.subr.mxu0 %v244
      %255 = vmatpush1.msra.mxu0 %v241
      %256 = vmatprep.subr.mxu0 0.0
      %257 = vmatpush1.msra.mxu0 0.0
      %258 = vmatprep.subr.mxu0 0.0
      %259 = vmatpush1.msra.mxu0 0.0
      %260 = vmatprep.subr.mxu0 0.0
      %261 = vmatpush1.msra.mxu0 0.0
      %262 = vmatprep.subr.mxu0 0.0
      %263 = vmatpush1.msra.mxu0 0.0
      %264 = vmatprep.subr.mxu0 0.0
      %265 = vmatpush1.msra.mxu0 0.0
      %266 = vmatprep.subr.mxu0 0.0
      %267 = vmatpush1.msra.mxu0 0.0
      %268 = vmatprep.subr.mxu0 0.0
      %269 = vmatpush1.msra.mxu0 0.0
      %270 = vmatprep.subr.mxu0 0.0
      %271 = vmatpush1.msra.mxu0 0.0
      %272 = vmatprep.subr.mxu0 0.0
      %273 = vmatpush1.msra.mxu0 0.0
      %274 = vmatprep.subr.mxu0 0.0
      %275 = vmatpush1.msra.mxu0 0.0
      %276 = vmatprep.subr.mxu0 0.0
      %277 = vmatpush1.msra.mxu0 0.0
      %278 = vmatprep.subr.mxu0 0.0
      %279 = vmatpush1.msra.mxu0 0.0
      %280 = vmatprep.subr.mxu0 0.0
      %281 = vmatpush1.msra.mxu0 0.0
      %282 = vmatprep.subr.mxu0 0.0
      %283 = vmatpush1.msra.mxu0 0.0
      %284 = vmatprep.subr.mxu0 0.0
      %285 = vmatpush1.msra.mxu0 0.0
      %286 = vmatprep.subr.mxu0 0.0
      %287 = vmatpush1.msra.mxu0 0.0
      %288 = vmatprep.subr.mxu0 0.0
      %289 = vmatpush1.msra.mxu0 0.0
      %290 = vmatprep.subr.mxu0 0.0
      %291 = vmatpush1.msra.mxu0 0.0
      %292 = vmatprep.subr.mxu0 0.0
      %293 = vmatpush1.msra.mxu0 0.0
      %294 = vmatprep.subr.mxu0 0.0
      %295 = vmatpush1.msra.mxu0 0.0
      %296 = vmatprep.subr.mxu0 0.0
      %297 = vmatpush1.msra.mxu0 0.0
      %298 = vmatprep.subr.mxu0 0.0
      %299 = vmatpush1.msra.mxu0 0.0
      %300 = vmatprep.subr.mxu0 0.0
      %301 = vmatpush1.msra.mxu0 0.0
      %302 = vmatprep.subr.mxu0 0.0
      %303 = vmatpush1.msra.mxu0 0.0
      %304 = vmatprep.subr.mxu0 0.0
      %305 = vmatpush1.msra.mxu0 0.0
      %306 = vmatprep.subr.mxu0 0.0
      %307 = vmatpush1.msra.mxu0 0.0
      %308 = vmatprep.subr.mxu0 0.0
      %309 = vmatpush1.msra.mxu0 0.0
      %310 = vmatprep.mubr.f32.mxu0 0.0
      %311 = vmatmul.mubr.f32.gmra.mrb[0].mxu0 %v237
      %v312 = vpop.f32.mrb[0].mxu0
      %v313 = vadd.f32 %v233, %v312
      %v314 = vpop.f32.mrb[0].mxu0
      %v315 = vadd.f32 %v233, %v314
      %316 = vdwg.mxu0
      %v317 = vld [vmem:[%s212] sm:$0xff]
      %v318 = vsel %vm239, %v313, 0.0
      %v319 = vsel %vm239, %v315, 0.0
      %v320 = vadd.f32 %v318, %v319
      %321 = vadd.xlane.f32.xlu0 %v320
      %v322 = vpop.xlane.xlu0 %321
      %v323 = vrcp.pop 256.0
      %v324 = vmul.f32 %v322, %v323
      %v325 = vsub.f32 %v313, %v324
      %v326 = vsub.f32 %v315, %v324
      %v327 = vmul.f32 %v325, %v325
      %v328 = vmul.f32 %v326, %v326
      %v329 = vsel %vm239, %v327, 0.0
      %v330 = vsel %vm239, %v328, 0.0
      %v331 = vadd.f32 %v329, %v330
      %332 = vadd.xlane.f32.xlu0 %v331
      %v333 = vpop.xlane.xlu0 %332
      %v334 = vmul.f32 %v333, %v323
      %v335 = vadd.f32 %v334, 1e-05
      %v336 = vrsqrt.pop %v335
      %v337 = vmul.f32 %v325, %v336
      %v338 = vmul.f32 %v326, %v336
      %v341 = vcombine.low %v337, %v338
      %v343 = vadd.f32 %v317, %v341
      %v344 = vmax.f32 %v343, 0.0
      %345 = vst [vmem:[%s217] sm:$0xff] %v344
      %p346 = scmp.lt.s32.totalorder %s15, 1
      %s347 = scalar_select %p346, %s15, 1
      %s348 = smul.addr %s347, 2
      %s349 = smul.addr %s348, 4
      %s350 = scalar_lea.vmem %s4, %s349
      // Predicated region
      $region37: #{resblock.3} parent=35 // pred_check
        %p351 = pneg %p127
      $region38: #{resblock.3} parent=35 // pred_check_branch
        %353 = sbr.rel (%p351) target = $region40
      $region39: #{resblock.3} parent=35 // pred_region
        _
      $region40: #{resblock.3} parent=35 // pred_fallthru
        _
    $region36: #{resblock.3} parent=5 // pred_fallthru
      _
    %p354 = scmp.le.s32.totalorder 2, %s10
    // Predicated region
    $region41: #{resblock.3} parent=5 // pred_check
      %p355 = pneg %p354
    $region42: #{resblock.3} parent=5 // pred_check_branch
      %357 = sbr.rel (%p355) target = $region44
    $region43: #{resblock.3} parent=5 // pred_region
      %s358 = ssub.s32 %s10, 2
      // Predicated region
      $region45: #{resblock.3} parent=43 // pred_check
        %p359 = pneg %p133
      $region46: #{resblock.3} parent=43 // pred_check_branch
        %361 = sbr.rel (%p359) target = $region48
      $region47: #{resblock.3} parent=43 // pred_region
        %p362 = scmp.lt.s32.totalorder %s16, 1
        %s363 = scalar_select %p362, %s16, 1
        %s364 = smul.addr %s363, 2
        %s365 = smul.addr %s364, 4
        %s366 = scalar_lea.vmem %s4, %s365
      $region48: #{resblock.3} parent=43 // pred_fallthru
        _
    $region44: #{resblock.3} parent=5 // pred_fallthru
      _
  $region6: #{resblock.3} parent=0 // loop_footer
    %s14 = sadd.s32 1, %s10
  $region7: #{resblock.3} parent=0 // loop_footer_branch
    %9 = sbr.rel target = $region3
  $region8: #{resblock.3} parent=0 // loop_exit
    _

</llo_original>
